<compile_context>
chip_gen: v7x
topology: tpu7x:2x2x1
jax: 0.10.0
libtpu: 0.0.40
codegen_flags: <defaults>
</compile_context>

<pallas_src>
from functools import partial

import jax
import jax.numpy as jnp
from jax import lax
from jax.experimental import pallas as pl
from jax.experimental.pallas import tpu as pltpu


def _round_up(v, m):
    return (v + m - 1) // m * m


def _ce_kernel(x_ref, w_ref, b_ref, t_ref, out_ref, *, total_b, tile_b):
    i = pl.program_id(0)

    # --- predictor: logits = x @ W + b (native dtype into MXU, f32 accumulate) ---
    logits = jnp.dot(x_ref[...], w_ref[...],
                     preferred_element_type=jnp.float32) + b_ref[...]     # [tb, Cp] f32
    rows, n_cls = logits.shape

    # --- cross entropy (log-softmax + NLL); padded classes carry a -1e30 bias ---
    row_max = jnp.max(logits, axis=-1, keepdims=True)                     # [tb, 1]
    shifted = logits - row_max
    lse = jnp.log(jnp.sum(jnp.exp(shifted), axis=-1, keepdims=True)) + row_max

    t = t_ref[...]                                                        # [tb, 1] int32
    class_ids = lax.broadcasted_iota(jnp.int32, (rows, n_cls), 1)         # [tb, Cp]
    # No one-hot temporary: gather the target logit with a single where + row-sum.
    target_logit = jnp.sum(jnp.where(class_ids == t, logits, 0.0),
                           axis=-1, keepdims=True)                        # [tb, 1]
    nll = lse - target_logit                                              # [tb, 1]

    # --- accuracy: argmax with lowest-index tie-break (matches torch.argmax) ---
    pred = jnp.min(jnp.where(logits == row_max, class_ids, n_cls),
                   axis=-1, keepdims=True)                                # [tb, 1]
    correct = (pred == t).astype(jnp.float32)                             # [tb, 1]

    # --- mask padded / out-of-bounds batch rows in the (possibly ragged) last tile ---
    row_ids = i * tile_b + lax.broadcasted_iota(jnp.int32, (rows, 1), 0)
    valid = row_ids < total_b                                             # [tb, 1] bool
    nll_sum = jnp.sum(jnp.where(valid, nll, 0.0))
    correct_sum = jnp.sum(jnp.where(valid, correct, 0.0))

    # --- per-tile partials: lane-dense (1, 8, 128) block, lane0=loss, lane1=correct ---
    sl = lax.broadcasted_iota(jnp.int32, (1, 8, 128), 1)
    ln = lax.broadcasted_iota(jnp.int32, (1, 8, 128), 2)
    out_ref[...] = (jnp.where((sl == 0) & (ln == 0), nll_sum, 0.0)
                    + jnp.where((sl == 0) & (ln == 1), correct_sum, 0.0))


def e_basic_forward(x, w, b, t, *, tb=None):
    """Returns (loss, accuracy). The nn.Module returns the loss; accuracy is the
    gstate.summary side statistic."""
    B, H = x.shape
    Hw, C = w.shape
    assert H == Hw
    assert t.shape == (B,)

    itemsize = x.dtype.itemsize
    pack = {4: 8, 2: 16, 1: 32}.get(itemsize, 8)   # sublane pack for x's dtype

    # Lane-dense class axis: pad W/b (tiny) only when C is not a multiple of 128.
    # Padded class columns get a -1e30 f32 bias so softmax / argmax are unaffected.
    if C % 128 == 0:
        C_pad = C
        w_p = w
        b_p = b.astype(jnp.float32).reshape(1, C)
    else:
        C_pad = _round_up(C, 128)
        w_p = jnp.zeros((H, C_pad), w.dtype).at[:, :C].set(w)
        b_p = jnp.full((1, C_pad), -1e30, jnp.float32).at[0, :C].set(
            b.astype(jnp.float32))

    t_2d = t.astype(jnp.int32).reshape(B, 1)

    # --- VMEM-aware batch-tile sizing -------------------------------------------
    H_vmem = _round_up(H, 128)                       # lane-padded footprint of an x row
    try:
        phys_vmem = int(getattr(pltpu.get_tpu_info(), "vmem_capacity_bytes", 64 << 20))
    except Exception:                                # conservative fallback (v7x-sized)
        phys_vmem = 64 << 20
    budget = (phys_vmem * 3) // 4                    # ~96 MiB v5e/v6e, ~48 MiB v7x

    w_vmem = H * C_pad * w_p.dtype.itemsize          # resident W, single-buffered
    b_vmem = 8 * C_pad * 4                           # (1, Cp) padded to 8 sublanes
    per_row = (2 * H_vmem * itemsize                 # x, double-buffered
               + 2 * 128 * 4                         # t, lane-padded, double-buffered
               + 4 * C_pad * 4)                      # f32 logits / softmax temporaries
    avail = budget - w_vmem - b_vmem - (2 << 20)     # 2 MiB slack for misc scratch
    tb_auto = max(pack, min(1024, avail // per_row))
    # TODO(synk): if W alone exceeds the budget (vocab-sized C), add a second grid
    # axis over C with online max/logsumexp + running argmax instead of resident W.

    if tb is None:
        tb = int(tb_auto)
    tb = max(pack, (int(tb) // pack) * pack)
    if B <= tb:
        tb = B                                       # single full-dim tile (any B allowed)
    n_tiles = -(-B // tb)                            # ragged last tile handled by masking

    cost = pl.CostEstimate(
        flops=2 * B * H * C_pad,
        transcendentals=B * C_pad,
        bytes_accessed=int(x.size * itemsize + w_p.size * w_p.dtype.itemsize
                           + b_p.size * 4 + t_2d.size * 4 + n_tiles * 8 * 128 * 4),
    )

    def build(single_buffer_resident):
        if single_buffer_resident:
            def resident(shape, index_map):
                return pl.BlockSpec(shape, index_map, pipeline_mode=pl.Buffered(1))
        else:
            def resident(shape, index_map):
                return pl.BlockSpec(shape, index_map)
        return pl.pallas_call(
            partial(_ce_kernel, total_b=B, tile_b=tb),
            out_shape=jax.ShapeDtypeStruct((n_tiles, 8, 128), jnp.float32),
            grid=(n_tiles,),
            in_specs=[
                pl.BlockSpec((tb, H), lambda i: (i, 0)),        # x: streamed, no HBM copy
                resident((H, C_pad), lambda i: (0, 0)),         # W: resident, 1-buffered
                resident((1, C_pad), lambda i: (0, 0)),         # b: resident, 1-buffered
                pl.BlockSpec((tb, 1), lambda i: (i, 0)),        # t: streamed
            ],
            out_specs=pl.BlockSpec((1, 8, 128), lambda i: (i, 0, 0)),
            compiler_params=pltpu.CompilerParams(
                # Each tile writes its own partial block -> batch axis is parallel
                # (both v7x TensorCores can be used).
                dimension_semantics=("parallel",),
                vmem_limit_bytes=int(budget),
            ),
            cost_estimate=cost,
        )

    try:
        partials = build(True)(x, w_p, b_p, t_2d)
    except Exception:
        # Fallback for JAX versions without pipeline_mode / Buffered(1) support.
        partials = build(False)(x, w_p, b_p, t_2d)

    # Finalize in the wrapper: sum per-tile partials, divide by the true batch size.
    loss = jnp.sum(partials[:, 0, 0]) / B
    acc = jnp.sum(partials[:, 0, 1]) / B
    return loss, acc


if __name__ == "__main__":
    key = jax.random.PRNGKey(0)

    # --- test 1: small shapes, single tile, padded class axis (C=16 -> 128) -----
    B, H, C = 8, 32, 16
    kx, kw, kb, kt, key = jax.random.split(key, 5)
    x = jax.random.normal(kx, (B, H), dtype=jnp.float32)
    # Deterministic predictor parameters (synthetic init, no checkpoint load).
    w = jax.random.normal(kw, (H, C), dtype=jnp.float32) * 0.1
    b = jax.random.normal(kb, (C,), dtype=jnp.float32) * 0.01
    t = jax.random.randint(kt, (B,), 0, C, dtype=jnp.int32)

    loss, acc = e_basic_forward(x, w, b, t)
    jax.block_until_ready((loss, acc))

    logits_ref = x @ w + b
    lse = jax.scipy.special.logsumexp(logits_ref, axis=-1)
    loss_ref = jnp.mean(lse - logits_ref[jnp.arange(B), t])
    acc_ref = jnp.mean((jnp.argmax(logits_ref, axis=-1) == t).astype(jnp.float32))
    assert jnp.allclose(loss, loss_ref, rtol=1e-5, atol=1e-5), (loss, loss_ref)
    assert jnp.allclose(acc, acc_ref, rtol=1e-5, atol=1e-5), (acc, acc_ref)

    # --- test 2: lane-dense H, multi-tile grid with a ragged (masked) last tile ---
    B2, H2, C2 = 20, 128, 16
    kx, kw, kb, kt, key = jax.random.split(key, 5)
    x2 = jax.random.normal(kx, (B2, H2), dtype=jnp.float32)
    w2 = jax.random.normal(kw, (H2, C2), dtype=jnp.float32) * 0.1
    b2 = jax.random.normal(kb, (C2,), dtype=jnp.float32) * 0.01
    t2 = jax.random.randint(kt, (B2,), 0, C2, dtype=jnp.int32)

    loss2, acc2 = e_basic_forward(x2, w2, b2, t2, tb=8)
    jax.block_until_ready((loss2, acc2))

    logits2 = x2 @ w2 + b2
    lse2 = jax.scipy.special.logsumexp(logits2, axis=-1)
    loss2_ref = jnp.mean(lse2 - logits2[jnp.arange(B2), t2])
    acc2_ref = jnp.mean((jnp.argmax(logits2, axis=-1) == t2).astype(jnp.float32))
    assert jnp.allclose(loss2, loss2_ref, rtol=1e-5, atol=1e-5), (loss2, loss2_ref)
    assert jnp.allclose(acc2, acc2_ref, rtol=1e-5, atol=1e-5), (acc2, acc2_ref)

    # TODO(synk): gstate.summary / gstate.clear_statics are host-side bookkeeping
    # with no kernel equivalent; loss and accuracy are returned instead.
    print("KERNEL_OK")
</pallas_src>

<mosaic_0001>
module attributes {stable_mosaic.version = 11 : i64} {
  func.func @_ce_kernel(%arg0: i32, %arg1: memref<8x32xf32, #tpu.memory_space<vmem>>, %arg2: memref<32x128xf32, #tpu.memory_space<vmem>>, %arg3: memref<1x128xf32, #tpu.memory_space<vmem>>, %arg4: memref<8x1xi32, #tpu.memory_space<vmem>>, %arg5: memref<1x8x128xf32, #tpu.memory_space<vmem>>) attributes {dimension_semantics = [#tpu.dimension_semantics<parallel>], iteration_bounds = array<i64: 1>, scalar_prefetch = 0 : i64, scratch_operands = 0 : i64, tpu.core_type = #tpu.core_type<tc>, window_params = [{transform_indices = @transform_0, window_bounds = array<i64: 8, 32>}, {pipeline_mode = #tpu.pipeline_mode<synchronous>, transform_indices = @transform_1, window_bounds = array<i64: 32, 128>}, {pipeline_mode = #tpu.pipeline_mode<synchronous>, transform_indices = @transform_2, window_bounds = array<i64: 1, 128>}, {transform_indices = @transform_3, window_bounds = array<i64: 8, 1>}, {transform_indices = @transform_4, window_bounds = array<i64: 1, 8, 128>}]} {
    %c0 = arith.constant 0 : index
    %c0_0 = arith.constant 0 : index
    %0 = vector.load %arg1[%c0, %c0_0] : memref<8x32xf32, #tpu.memory_space<vmem>>, vector<8x32xf32>
    %c0_1 = arith.constant 0 : index
    %c0_2 = arith.constant 0 : index
    %1 = vector.load %arg2[%c0_1, %c0_2] : memref<32x128xf32, #tpu.memory_space<vmem>>, vector<32x128xf32>
    %cst = arith.constant dense<0.000000e+00> : vector<8x128xf32>
    %2 = tpu.matmul %0, %1, %cst {dimension_numbers = #tpu.dot_dimension_numbers<[1], [0], [0], [1], [0, 0, 1, 1], [], []>} : vector<8x32xf32>, vector<32x128xf32>, vector<8x128xf32> -> vector<8x128xf32>
    %c0_3 = arith.constant 0 : index
    %c0_4 = arith.constant 0 : index
    %3 = vector.load %arg3[%c0_3, %c0_4] : memref<1x128xf32, #tpu.memory_space<vmem>>, vector<1x128xf32>
    %4 = vector.broadcast %3 : vector<1x128xf32> to vector<8x128xf32>
    %5 = arith.addf %2, %4 : vector<8x128xf32>
    %cst_5 = arith.constant dense<0xFF800000> : vector<8xf32>
    %6 = vector.multi_reduction <maximumf>, %5, %cst_5 [1] : vector<8x128xf32> to vector<8xf32>
    %7 = vector.shape_cast %6 : vector<8xf32> to vector<8x1xf32>
    %8 = vector.broadcast %7 : vector<8x1xf32> to vector<8x128xf32>
    %9 = arith.subf %5, %8 : vector<8x128xf32>
    %10 = math.exp %9 : vector<8x128xf32>
    %cst_6 = arith.constant dense<0.000000e+00> : vector<8xf32>
    %11 = vector.multi_reduction <add>, %10, %cst_6 [1] : vector<8x128xf32> to vector<8xf32>
    %12 = vector.shape_cast %11 : vector<8xf32> to vector<8x1xf32>
    %13 = math.log %12 : vector<8x1xf32>
    %14 = arith.addf %13, %7 : vector<8x1xf32>
    %c0_7 = arith.constant 0 : index
    %c0_8 = arith.constant 0 : index
    %15 = vector.load %arg4[%c0_7, %c0_8] : memref<8x1xi32, #tpu.memory_space<vmem>>, vector<8x1xi32>
    %16 = tpu.iota {dimensions = array<i32: 1>} : vector<8x128xi32>
    %17 = vector.broadcast %15 : vector<8x1xi32> to vector<8x128xi32>
    %18 = arith.cmpi eq, %16, %17 : vector<8x128xi32>
    %cst_9 = arith.constant 0.000000e+00 : f32
    %19 = vector.broadcast %cst_9 : f32 to vector<8x128xf32>
    %20 = arith.select %18, %5, %19 : vector<8x128xi1>, vector<8x128xf32>
    %cst_10 = arith.constant dense<0.000000e+00> : vector<8xf32>
    %21 = vector.multi_reduction <add>, %20, %cst_10 [1] : vector<8x128xf32> to vector<8xf32>
    %22 = vector.shape_cast %21 : vector<8xf32> to vector<8x1xf32>
    %23 = arith.subf %14, %22 : vector<8x1xf32>
    %24 = vector.broadcast %7 : vector<8x1xf32> to vector<8x128xf32>
    %25 = arith.cmpf oeq, %5, %24 : vector<8x128xf32>
    %c128_i32 = arith.constant 128 : i32
    %26 = vector.broadcast %c128_i32 : i32 to vector<8x128xi32>
    %27 = arith.select %25, %16, %26 : vector<8x128xi1>, vector<8x128xi32>
    %cst_11 = arith.constant dense<2147483647> : vector<8xi32>
    %28 = vector.multi_reduction <minsi>, %27, %cst_11 [1] : vector<8x128xi32> to vector<8xi32>
    %29 = vector.shape_cast %28 : vector<8xi32> to vector<8x1xi32>
    %30 = arith.cmpi eq, %29, %15 : vector<8x1xi32>
    %31 = arith.extui %30 : vector<8x1xi1> to vector<8x1xi32>
    %32 = arith.sitofp %31 : vector<8x1xi32> to vector<8x1xf32>
    %c8_i32 = arith.constant 8 : i32
    %33 = arith.muli %arg0, %c8_i32 : i32
    %34 = tpu.iota {dimensions = array<i32: 0>} : vector<8x1xi32>
    %35 = vector.broadcast %33 : i32 to vector<8x1xi32>
    %36 = arith.addi %35, %34 : vector<8x1xi32>
    %c8_i32_12 = arith.constant 8 : i32
    %37 = vector.broadcast %c8_i32_12 : i32 to vector<8x1xi32>
    %38 = arith.cmpi slt, %36, %37 : vector<8x1xi32>
    %cst_13 = arith.constant 0.000000e+00 : f32
    %39 = vector.broadcast %cst_13 : f32 to vector<8x1xf32>
    %40 = arith.select %38, %23, %39 : vector<8x1xi1>, vector<8x1xf32>
    %41 = vector.shape_cast %40 : vector<8x1xf32> to vector<1x8x1xf32>
    %cst_14 = arith.constant dense<0.000000e+00> : vector<1xf32>
    %42 = vector.multi_reduction <add>, %41, %cst_14 [1, 2] : vector<1x8x1xf32> to vector<1xf32>
    %43 = vector.shape_cast %42 : vector<1xf32> to vector<1x1x1xf32>
    %44 = vector.extract %43[0, 0, 0] : f32 from vector<1x1x1xf32>
    %cst_15 = arith.constant 0.000000e+00 : f32
    %45 = vector.broadcast %cst_15 : f32 to vector<8x1xf32>
    %46 = arith.select %38, %32, %45 : vector<8x1xi1>, vector<8x1xf32>
    %47 = vector.shape_cast %46 : vector<8x1xf32> to vector<1x8x1xf32>
    %cst_16 = arith.constant dense<0.000000e+00> : vector<1xf32>
    %48 = vector.multi_reduction <add>, %47, %cst_16 [1, 2] : vector<1x8x1xf32> to vector<1xf32>
    %49 = vector.shape_cast %48 : vector<1xf32> to vector<1x1x1xf32>
    %50 = vector.extract %49[0, 0, 0] : f32 from vector<1x1x1xf32>
    %51 = tpu.iota {dimensions = array<i32: 1>} : vector<1x8x128xi32>
    %52 = tpu.iota {dimensions = array<i32: 2>} : vector<1x8x128xi32>
    %c0_i32 = arith.constant 0 : i32
    %53 = vector.broadcast %c0_i32 : i32 to vector<1x8x128xi32>
    %54 = arith.cmpi eq, %51, %53 : vector<1x8x128xi32>
    %c0_i32_17 = arith.constant 0 : i32
    %55 = vector.broadcast %c0_i32_17 : i32 to vector<1x8x128xi32>
    %56 = arith.cmpi eq, %52, %55 : vector<1x8x128xi32>
    %57 = arith.andi %54, %56 : vector<1x8x128xi1>
    %cst_18 = arith.constant 0.000000e+00 : f32
    %58 = vector.broadcast %44 : f32 to vector<1x8x128xf32>
    %59 = vector.broadcast %cst_18 : f32 to vector<1x8x128xf32>
    %60 = arith.select %57, %58, %59 : vector<1x8x128xi1>, vector<1x8x128xf32>
    %c0_i32_19 = arith.constant 0 : i32
    %61 = vector.broadcast %c0_i32_19 : i32 to vector<1x8x128xi32>
    %62 = arith.cmpi eq, %51, %61 : vector<1x8x128xi32>
    %c1_i32 = arith.constant 1 : i32
    %63 = vector.broadcast %c1_i32 : i32 to vector<1x8x128xi32>
    %64 = arith.cmpi eq, %52, %63 : vector<1x8x128xi32>
    %65 = arith.andi %62, %64 : vector<1x8x128xi1>
    %cst_20 = arith.constant 0.000000e+00 : f32
    %66 = vector.broadcast %50 : f32 to vector<1x8x128xf32>
    %67 = vector.broadcast %cst_20 : f32 to vector<1x8x128xf32>
    %68 = arith.select %65, %66, %67 : vector<1x8x128xi1>, vector<1x8x128xf32>
    %69 = arith.addf %60, %68 : vector<1x8x128xf32>
    %c0_21 = arith.constant 0 : index
    %c0_22 = arith.constant 0 : index
    %c0_23 = arith.constant 0 : index
    %70 = vector.load %arg5[%c0_21, %c0_22, %c0_23] : memref<1x8x128xf32, #tpu.memory_space<vmem>>, vector<1x8x128xf32>
    tpu.vector_store %arg5[%c0_21, %c0_22, %c0_23], %69 {strides = array<i32>} : memref<1x8x128xf32, #tpu.memory_space<vmem>>, vector<1x8x128xf32>,
    return
  }
  func.func @transform_0(%arg0: i32) -> (i32, i32) {
    %c0_i32 = arith.constant 0 : i32
    %c0_i32_0 = arith.constant 0 : i32
    return %arg0, %c0_i32 : i32, i32
  }
  func.func @transform_1(%arg0: i32) -> (i32, i32) {
    %c0_i32 = arith.constant 0 : i32
    %c0_i32_0 = arith.constant 0 : i32
    %c0_i32_1 = arith.constant 0 : i32
    return %c0_i32, %c0_i32_0 : i32, i32
  }
  func.func @transform_2(%arg0: i32) -> (i32, i32) {
    %c0_i32 = arith.constant 0 : i32
    %c0_i32_0 = arith.constant 0 : i32
    %c0_i32_1 = arith.constant 0 : i32
    return %c0_i32, %c0_i32_0 : i32, i32
  }
  func.func @transform_3(%arg0: i32) -> (i32, i32) {
    %c0_i32 = arith.constant 0 : i32
    %c0_i32_0 = arith.constant 0 : i32
    return %arg0, %c0_i32 : i32, i32
  }
  func.func @transform_4(%arg0: i32) -> (i32, i32, i32) {
    %c0_i32 = arith.constant 0 : i32
    %c0_i32_0 = arith.constant 0 : i32
    %c0_i32_1 = arith.constant 0 : i32
    return %arg0, %c0_i32, %c0_i32_0 : i32, i32, i32
  }
}

module attributes {stable_mosaic.version = 11 : i64} {
  func.func @_ce_kernel(%arg0: i32, %arg1: memref<8x32xf32, #tpu.memory_space<vmem>>, %arg2: memref<32x128xf32, #tpu.memory_space<vmem>>, %arg3: memref<1x128xf32, #tpu.memory_space<vmem>>, %arg4: memref<8x1xi32, #tpu.memory_space<vmem>>, %arg5: memref<1x8x128xf32, #tpu.memory_space<vmem>>) attributes {dimension_semantics = [#tpu.dimension_semantics<parallel>], iteration_bounds = array<i64: 1>, scalar_prefetch = 0 : i64, scratch_operands = 0 : i64, tpu.core_type = #tpu.core_type<tc>, window_params = [{transform_indices = @transform_0, window_bounds = array<i64: 8, 32>}, {pipeline_mode = #tpu.pipeline_mode<synchronous>, transform_indices = @transform_1, window_bounds = array<i64: 32, 128>}, {pipeline_mode = #tpu.pipeline_mode<synchronous>, transform_indices = @transform_2, window_bounds = array<i64: 1, 128>}, {transform_indices = @transform_3, window_bounds = array<i64: 8, 1>}, {transform_indices = @transform_4, window_bounds = array<i64: 1, 8, 128>}]} {
    %c0 = arith.constant 0 : index
    %c0_0 = arith.constant 0 : index
    %0 = vector.load %arg1[%c0, %c0_0] : memref<8x32xf32, #tpu.memory_space<vmem>>, vector<8x32xf32>
    %c0_1 = arith.constant 0 : index
    %c0_2 = arith.constant 0 : index
    %1 = vector.load %arg2[%c0_1, %c0_2] : memref<32x128xf32, #tpu.memory_space<vmem>>, vector<32x128xf32>
    %cst = arith.constant dense<0.000000e+00> : vector<8x128xf32>
    %2 = tpu.matmul %0, %1, %cst {dimension_numbers = #tpu.dot_dimension_numbers<[1], [0], [0], [1], [0, 0, 1, 1], [], []>} : vector<8x32xf32>, vector<32x128xf32>, vector<8x128xf32> -> vector<8x128xf32>
    %c0_3 = arith.constant 0 : index
    %c0_4 = arith.constant 0 : index
    %3 = vector.load %arg3[%c0_3, %c0_4] : memref<1x128xf32, #tpu.memory_space<vmem>>, vector<1x128xf32>
    %4 = vector.broadcast %3 : vector<1x128xf32> to vector<8x128xf32>
    %5 = arith.addf %2, %4 : vector<8x128xf32>
    %cst_5 = arith.constant dense<0xFF800000> : vector<8xf32>
    %6 = vector.multi_reduction <maximumf>, %5, %cst_5 [1] : vector<8x128xf32> to vector<8xf32>
    %7 = vector.shape_cast %6 : vector<8xf32> to vector<8x1xf32>
    %8 = vector.broadcast %7 : vector<8x1xf32> to vector<8x128xf32>
    %9 = arith.subf %5, %8 : vector<8x128xf32>
    %10 = math.exp %9 : vector<8x128xf32>
    %cst_6 = arith.constant dense<0.000000e+00> : vector<8xf32>
    %11 = vector.multi_reduction <add>, %10, %cst_6 [1] : vector<8x128xf32> to vector<8xf32>
    %12 = vector.shape_cast %11 : vector<8xf32> to vector<8x1xf32>
    %13 = math.log %12 : vector<8x1xf32>
    %14 = arith.addf %13, %7 : vector<8x1xf32>
    %c0_7 = arith.constant 0 : index
    %c0_8 = arith.constant 0 : index
    %15 = vector.load %arg4[%c0_7, %c0_8] : memref<8x1xi32, #tpu.memory_space<vmem>>, vector<8x1xi32>
    %16 = tpu.iota {dimensions = array<i32: 1>} : vector<8x128xi32>
    %17 = vector.broadcast %15 : vector<8x1xi32> to vector<8x128xi32>
    %18 = arith.cmpi eq, %16, %17 : vector<8x128xi32>
    %cst_9 = arith.constant 0.000000e+00 : f32
    %19 = vector.broadcast %cst_9 : f32 to vector<8x128xf32>
    %20 = arith.select %18, %5, %19 : vector<8x128xi1>, vector<8x128xf32>
    %cst_10 = arith.constant dense<0.000000e+00> : vector<8xf32>
    %21 = vector.multi_reduction <add>, %20, %cst_10 [1] : vector<8x128xf32> to vector<8xf32>
    %22 = vector.shape_cast %21 : vector<8xf32> to vector<8x1xf32>
    %23 = arith.subf %14, %22 : vector<8x1xf32>
    %24 = vector.broadcast %7 : vector<8x1xf32> to vector<8x128xf32>
    %25 = arith.cmpf oeq, %5, %24 : vector<8x128xf32>
    %c128_i32 = arith.constant 128 : i32
    %26 = vector.broadcast %c128_i32 : i32 to vector<8x128xi32>
    %27 = arith.select %25, %16, %26 : vector<8x128xi1>, vector<8x128xi32>
    %cst_11 = arith.constant dense<2147483647> : vector<8xi32>
    %28 = vector.multi_reduction <minsi>, %27, %cst_11 [1] : vector<8x128xi32> to vector<8xi32>
    %29 = vector.shape_cast %28 : vector<8xi32> to vector<8x1xi32>
    %30 = arith.cmpi eq, %29, %15 : vector<8x1xi32>
    %31 = arith.extui %30 : vector<8x1xi1> to vector<8x1xi32>
    %32 = arith.sitofp %31 : vector<8x1xi32> to vector<8x1xf32>
    %c8_i32 = arith.constant 8 : i32
    %33 = arith.muli %arg0, %c8_i32 : i32
    %34 = tpu.iota {dimensions = array<i32: 0>} : vector<8x1xi32>
    %35 = vector.broadcast %33 : i32 to vector<8x1xi32>
    %36 = arith.addi %35, %34 : vector<8x1xi32>
    %c8_i32_12 = arith.constant 8 : i32
    %37 = vector.broadcast %c8_i32_12 : i32 to vector<8x1xi32>
    %38 = arith.cmpi slt, %36, %37 : vector<8x1xi32>
    %cst_13 = arith.constant 0.000000e+00 : f32
    %39 = vector.broadcast %cst_13 : f32 to vector<8x1xf32>
    %40 = arith.select %38, %23, %39 : vector<8x1xi1>, vector<8x1xf32>
    %41 = vector.shape_cast %40 : vector<8x1xf32> to vector<1x8x1xf32>
    %cst_14 = arith.constant dense<0.000000e+00> : vector<1xf32>
    %42 = vector.multi_reduction <add>, %41, %cst_14 [1, 2] : vector<1x8x1xf32> to vector<1xf32>
    %43 = vector.shape_cast %42 : vector<1xf32> to vector<1x1x1xf32>
    %44 = vector.extract %43[0, 0, 0] : f32 from vector<1x1x1xf32>
    %cst_15 = arith.constant 0.000000e+00 : f32
    %45 = vector.broadcast %cst_15 : f32 to vector<8x1xf32>
    %46 = arith.select %38, %32, %45 : vector<8x1xi1>, vector<8x1xf32>
    %47 = vector.shape_cast %46 : vector<8x1xf32> to vector<1x8x1xf32>
    %cst_16 = arith.constant dense<0.000000e+00> : vector<1xf32>
    %48 = vector.multi_reduction <add>, %47, %cst_16 [1, 2] : vector<1x8x1xf32> to vector<1xf32>
    %49 = vector.shape_cast %48 : vector<1xf32> to vector<1x1x1xf32>
    %50 = vector.extract %49[0, 0, 0] : f32 from vector<1x1x1xf32>
    %51 = tpu.iota {dimensions = array<i32: 1>} : vector<1x8x128xi32>
    %52 = tpu.iota {dimensions = array<i32: 2>} : vector<1x8x128xi32>
    %c0_i32 = arith.constant 0 : i32
    %53 = vector.broadcast %c0_i32 : i32 to vector<1x8x128xi32>
    %54 = arith.cmpi eq, %51, %53 : vector<1x8x128xi32>
    %c0_i32_17 = arith.constant 0 : i32
    %55 = vector.broadcast %c0_i32_17 : i32 to vector<1x8x128xi32>
    %56 = arith.cmpi eq, %52, %55 : vector<1x8x128xi32>
    %57 = arith.andi %54, %56 : vector<1x8x128xi1>
    %cst_18 = arith.constant 0.000000e+00 : f32
    %58 = vector.broadcast %44 : f32 to vector<1x8x128xf32>
    %59 = vector.broadcast %cst_18 : f32 to vector<1x8x128xf32>
    %60 = arith.select %57, %58, %59 : vector<1x8x128xi1>, vector<1x8x128xf32>
    %c0_i32_19 = arith.constant 0 : i32
    %61 = vector.broadcast %c0_i32_19 : i32 to vector<1x8x128xi32>
    %62 = arith.cmpi eq, %51, %61 : vector<1x8x128xi32>
    %c1_i32 = arith.constant 1 : i32
    %63 = vector.broadcast %c1_i32 : i32 to vector<1x8x128xi32>
    %64 = arith.cmpi eq, %52, %63 : vector<1x8x128xi32>
    %65 = arith.andi %62, %64 : vector<1x8x128xi1>
    %cst_20 = arith.constant 0.000000e+00 : f32
    %66 = vector.broadcast %50 : f32 to vector<1x8x128xf32>
    %67 = vector.broadcast %cst_20 : f32 to vector<1x8x128xf32>
    %68 = arith.select %65, %66, %67 : vector<1x8x128xi1>, vector<1x8x128xf32>
    %69 = arith.addf %60, %68 : vector<1x8x128xf32>
    %c0_21 = arith.constant 0 : index
    %c0_22 = arith.constant 0 : index
    %c0_23 = arith.constant 0 : index
    %70 = vector.load %arg5[%c0_21, %c0_22, %c0_23] : memref<1x8x128xf32, #tpu.memory_space<vmem>>, vector<1x8x128xf32>
    tpu.vector_store %arg5[%c0_21, %c0_22, %c0_23], %69 {strides = array<i32>} : memref<1x8x128xf32, #tpu.memory_space<vmem>>, vector<1x8x128xf32>,
    return
  }
  func.func @transform_0(%arg0: i32) -> (i32, i32) {
    %c0_i32 = arith.constant 0 : i32
    %c0_i32_0 = arith.constant 0 : i32
    return %arg0, %c0_i32 : i32, i32
  }
  func.func @transform_1(%arg0: i32) -> (i32, i32) {
    %c0_i32 = arith.constant 0 : i32
    %c0_i32_0 = arith.constant 0 : i32
    %c0_i32_1 = arith.constant 0 : i32
    return %c0_i32, %c0_i32_0 : i32, i32
  }
  func.func @transform_2(%arg0: i32) -> (i32, i32) {
    %c0_i32 = arith.constant 0 : i32
    %c0_i32_0 = arith.constant 0 : i32
    %c0_i32_1 = arith.constant 0 : i32
    return %c0_i32, %c0_i32_0 : i32, i32
  }
  func.func @transform_3(%arg0: i32) -> (i32, i32) {
    %c0_i32 = arith.constant 0 : i32
    %c0_i32_0 = arith.constant 0 : i32
    return %arg0, %c0_i32 : i32, i32
  }
  func.func @transform_4(%arg0: i32) -> (i32, i32, i32) {
    %c0_i32 = arith.constant 0 : i32
    %c0_i32_0 = arith.constant 0 : i32
    %c0_i32_1 = arith.constant 0 : i32
    return %arg0, %c0_i32, %c0_i32_0 : i32, i32, i32
  }
}

</mosaic_0001>

<llo_original>
// kernel: tpu_custom_call.1
$region0: #{tpu_custom_call.1}
  #allocation0 [shape = 'u32[]', space=smem, size = 0x4, offset = 0x4, fixed_abs, tag = 'smem constant byte address 0x4 - core index']
  #allocation1 [shape = 'u32[144,128]{1,0:T(1,128)}', space=vmem, size = 0x12000, scoped, tag = 'internal scratch']
  %s0 = inlined_call_operand.vmem [shape: f32[8,32], index: 0, kind: input, shape index: {}]
  %s1 = inlined_call_operand.hbm [shape: f32[32,128], index: 1, kind: input, shape index: {}]
  %s2 = inlined_call_operand.vmem [shape: f32[1,128], index: 2, kind: input, shape index: {}]
  %s3 = inlined_call_operand.vmem [shape: s32[8,1], index: 3, kind: input, shape index: {}]
  %s4 = inlined_call_operand.hbm [shape: f32[1,8,128], index: 4, kind: output, shape index: {}]
  %s5 = sld [smem:[#allocation0]]
  $region30: #{tpu_custom_call.1} parent=0
    _
  %s7 = ssub.s32 1, %s5
  %s8 = scalar_select 0, %s7, %s5
  $region1: #{tpu_custom_call.1} parent=0
    #allocation2 [shape = 'u8[16384]{0}', space=vmem, size = 0x4000, scoped, tag = 'input window, operand 1, single buffered']
    #allocation3 [shape = 's32[1]{0}', space=sflag, size = 0x4, scoped, tag = 'scoped memory for tpu_custom_call.1']
    #allocation4 [shape = 's32[1]{0}', space=sflag, size = 0x4, scoped, tag = 'scoped memory for tpu_custom_call.1']
    #allocation5 [shape = 'u8[4096]{0}', space=vmem, size = 0x1000, scoped, tag = 'output window, operand 0, single buffered']
    %9 = vsyncpa [#allocation3], 0
    %10 = vsyncpa [#allocation4], 0
    // Predicated region
    $region2: #{tpu_custom_call.1} parent=1 // pred_check
      _
    $region3: #{tpu_custom_call.1} parent=1 // pred_check_branch
      %12 = sbr.rel (0) target = $region5
    $region4: #{tpu_custom_call.1} parent=1 // pred_region
      _
    $region5: #{tpu_custom_call.1} parent=1 // pred_fallthru
      _
    // Predicated region
    $region6: #{tpu_custom_call.1} parent=1 // pred_check
      _
    $region7: #{tpu_custom_call.1} parent=1 // pred_check_branch
      %14 = sbr.rel (0) target = $region9
    $region8: #{tpu_custom_call.1} parent=1 // pred_region
      %s16 = ssub.s32 512, 512
      %17 = vsyncadd [#allocation3], %s16
      %s18 = sshll.u32 [#allocation2], 4
      %s19 = int_to_ptr.vmem [resolvable:$true] %s18
      %24 = dma.hbm_to_vmem [thread:$0]  %s1, 512, %s19, [#allocation3], 128, 128, 8
    $region9: #{tpu_custom_call.1} parent=1 // pred_fallthru
      _
    // Predicated region
    $region10: #{tpu_custom_call.1} parent=1 // pred_check
      _
    $region11: #{tpu_custom_call.1} parent=1 // pred_check_branch
      %26 = sbr.rel (0) target = $region13
    $region12: #{tpu_custom_call.1} parent=1 // pred_region
      _
    $region13: #{tpu_custom_call.1} parent=1 // pred_fallthru
      _
    // Predicated region
    $region14: #{tpu_custom_call.1} parent=1 // pred_check
      _
    $region15: #{tpu_custom_call.1} parent=1 // pred_check_branch
      %28 = sbr.rel (0) target = $region17
    $region16: #{tpu_custom_call.1} parent=1 // pred_region
      _
    $region17: #{tpu_custom_call.1} parent=1 // pred_fallthru
      _
    // Predicated region
    $region18: #{tpu_custom_call.1} parent=1 // pred_check
      _
    $region19: #{tpu_custom_call.1} parent=1 // pred_check_branch
      %30 = sbr.rel (0) target = $region21
    $region20: #{tpu_custom_call.1} parent=1 // pred_region
      %31 = dma.done [#allocation3], 512
    $region21: #{tpu_custom_call.1} parent=1 // pred_fallthru
      _
    %v32 = vld [vmem:[%s0] sm:$0xff]
    %v33 = vld [vmem:[#allocation2] sm:$0xff]
    %v34 = vld [vmem:[#allocation2 + $0x8] sm:$0xff]
    %v35 = vld [vmem:[#allocation2 + $0x10] sm:$0xff]
    %v36 = vld [vmem:[#allocation2 + $0x18] sm:$0xff]
    %v37 = vld [vmem:[%s2] sm:$0x1]
    %v39 = vlaneseq
    %v40 = vshrl.u32 %v39, 7
    %v41 = vsub.s32 0, %v40
    %v42 = vrot.slane %v37, %v41
    %vm44 = vcmask 261120
    %v46 = vsel %vm44, %v32, 0
    %48 = vmatprep.subr.mxu0 0.0
    %49 = vmatpush1.msra.mxu0 %v33
    %50 = vmatprep.subr.mxu0 0.0
    %51 = vmatpush1.msra.mxu0 %v34
    %52 = vmatprep.subr.mxu0 0.0
    %53 = vmatpush1.msra.mxu0 %v35
    %54 = vmatprep.subr.mxu0 0.0
    %55 = vmatpush1.msra.mxu0 %v36
    %56 = vmatprep.subr.mxu0 0.0
    %57 = vmatpush1.msra.mxu0 0.0
    %58 = vmatprep.subr.mxu0 0.0
    %59 = vmatpush1.msra.mxu0 0.0
    %60 = vmatprep.subr.mxu0 0.0
    %61 = vmatpush1.msra.mxu0 0.0
    %62 = vmatprep.subr.mxu0 0.0
    %63 = vmatpush1.msra.mxu0 0.0
    %64 = vmatprep.subr.mxu0 0.0
    %65 = vmatpush1.msra.mxu0 0.0
    %66 = vmatprep.subr.mxu0 0.0
    %67 = vmatpush1.msra.mxu0 0.0
    %68 = vmatprep.subr.mxu0 0.0
    %69 = vmatpush1.msra.mxu0 0.0
    %70 = vmatprep.subr.mxu0 0.0
    %71 = vmatpush1.msra.mxu0 0.0
    %72 = vmatprep.subr.mxu0 0.0
    %73 = vmatpush1.msra.mxu0 0.0
    %74 = vmatprep.subr.mxu0 0.0
    %75 = vmatpush1.msra.mxu0 0.0
    %76 = vmatprep.subr.mxu0 0.0
    %77 = vmatpush1.msra.mxu0 0.0
    %78 = vmatprep.subr.mxu0 0.0
    %79 = vmatpush1.msra.mxu0 0.0
    %80 = vmatprep.subr.mxu0 0.0
    %81 = vmatpush1.msra.mxu0 0.0
    %82 = vmatprep.subr.mxu0 0.0
    %83 = vmatpush1.msra.mxu0 0.0
    %84 = vmatprep.subr.mxu0 0.0
    %85 = vmatpush1.msra.mxu0 0.0
    %86 = vmatprep.subr.mxu0 0.0
    %87 = vmatpush1.msra.mxu0 0.0
    %88 = vmatprep.subr.mxu0 0.0
    %89 = vmatpush1.msra.mxu0 0.0
    %90 = vmatprep.subr.mxu0 0.0
    %91 = vmatpush1.msra.mxu0 0.0
    %92 = vmatprep.subr.mxu0 0.0
    %93 = vmatpush1.msra.mxu0 0.0
    %94 = vmatprep.subr.mxu0 0.0
    %95 = vmatpush1.msra.mxu0 0.0
    %96 = vmatprep.subr.mxu0 0.0
    %97 = vmatpush1.msra.mxu0 0.0
    %98 = vmatprep.subr.mxu0 0.0
    %99 = vmatpush1.msra.mxu0 0.0
    %100 = vmatprep.subr.mxu0 0.0
    %101 = vmatpush1.msra.mxu0 0.0
    %102 = vmatprep.subr.mxu0 0.0
    %103 = vmatpush1.msra.mxu0 0.0
    %104 = vmatprep.subr.mxu0 0.0
    %105 = vmatpush1.msra.mxu0 0.0
    %106 = vmatprep.subr.mxu0 0.0
    %107 = vmatpush1.msra.mxu0 0.0
    %108 = vmatprep.subr.mxu0 0.0
    %109 = vmatpush1.msra.mxu0 0.0
    %110 = vmatprep.subr.mxu0 0.0
    %111 = vmatpush1.msra.mxu0 0.0
    %112 = vmatprep.mubr.f32.mxu0 0.0
    %113 = vmatmul.mubr.f32.gmra.mrb[0].mxu0 %v46
    %v114 = vpop.f32.mrb[0].mxu0
    %v115 = vadd.f32 %v42, %v114
    %v116 = vpop.f32.mrb[0].mxu0
    %117 = vdwg.mxu0
    %118 = vmax.xlane.f32.xlu0 %v115
    %v119 = vpop.xlane.xlu0 %118
    %v120 = vsub.f32 %v115, %v119
    %v121 = vmul.f32 %v120, 1.442695
    %v122 = vpow.pop %v121
    %123 = vadd.xlane.f32.xlu0 %v122
    %v124 = vpop.xlane.xlu0 %123
    %v125 = vlog2.pop %v124
    %v126 = vmul.f32 %v125, 0.6931472
    %v127 = vadd.f32 %v126, %v119
    %v128 = vld [vmem:[%s3] sm:$0xff]
    %v129 = vlaneseq
    %v130 = vand.u32 %v129, 127
    %131 = vset.pattern.permute.xlu0 0
    %132 = vperm.xlu0 %131, %v128
    %v133 = vpop.permute.xlu0 %132
    %vm134 = vcmp.eq.s32.totalorder %v130, %v133
    %v135 = vsel %vm134, %v115, 0.0
    %136 = vadd.xlane.f32.xlu0 %v135
    %v137 = vpop.xlane.xlu0 %136
    %v138 = vsub.f32 %v127, %v137
    %vm139 = vcmp.eq.f32.partialorder %v115, %v119
    %v140 = vsel %vm139, %v130, 128
    %v141 = vand.u32 %v140, 65535
    %v142 = vshra.s32 %v140, 16
    %v143 = vcvt.s32.f32 %v141
    %v144 = vcvt.s32.f32 %v142
    %145 = vmin.xlane.f32.xlu0 %v144
    %v146 = vpop.xlane.xlu0 %145
    %vm147 = vcmp.eq.f32.partialorder %v144, %v146
    %v148 = vsel %vm147, %v143, inf
    %149 = vmin.xlane.f32.xlu0 %v148
    %v150 = vpop.xlane.xlu0 %149
    %v151 = vcvt.f32.s32 %v150
    %v152 = vcvt.f32.s32 %v146
    %v153 = vshll.u32 %v152, 16
    %v154 = vadd.s32 %v153, %v151
    %vm155 = vcmp.eq.s32.totalorder %v154, %v128
    %v156 = vsel %vm155, 1, 0
    %v157 = vcvt.s32.f32 %v156
    %s158 = smul.u32 0, 8
    %v159 = vlaneseq
    %v160 = vshrl.u32 %v159, 7
    %v161 = vstv %s158
    %v162 = vadd.s32 %v161, %v160
    %vm163 = vcmp.lt.s32.totalorder %v162, 8
    %v164 = vsel %vm163, %v138, 0.0
    %vm165 = vcmask 7168
    %v166 = vsel %vm165, %v164, 0.0
    %167 = vadd.xlane.f32.xlu0 %v166
    %v168 = vpop.xlane.xlu0 %167
    %v169 = vrot.slane %v168, 4
    %v170 = vadd.f32 %v168, %v169
    %v171 = vrot.slane %v170, 2
    %v172 = vadd.f32 %v170, %v171
    %v173 = vrot.slane %v172, 1
    %v174 = vadd.f32 %v172, %v173
    %s175 = vtos %v174
    %v176 = vsel %vm163, %v157, 0.0
    %v177 = vsel %vm165, %v176, 0.0
    %178 = vadd.xlane.f32.xlu0 %v177
    %v179 = vpop.xlane.xlu0 %178
    %v180 = vrot.slane %v179, 4
    %v181 = vadd.f32 %v179, %v180
    %v182 = vrot.slane %v181, 2
    %v183 = vadd.f32 %v181, %v182
    %v184 = vrot.slane %v183, 1
    %v185 = vadd.f32 %v183, %v184
    %s186 = vtos %v185
    %vm187 = vcmp.eq.s32.totalorder %v160, 0
    %vm188 = vcmp.eq.s32.totalorder %v130, 0
    %vm189 = vmand %vm187, %vm188
    %v190 = vstv %s175
    %v191 = vsel %vm189, %v190, 0.0
    %vm192 = vcmp.eq.s32.totalorder %v130, 1
    %vm193 = vmand %vm187, %vm192
    %v194 = vstv %s186
    %v195 = vsel %vm193, %v194, 0.0
    %v196 = vadd.f32 %v191, %v195
    %197 = vst [vmem:[#allocation5] sm:$0xff] %v196
    // Predicated region
    $region22: #{tpu_custom_call.1} parent=1 // pred_check
      _
    $region23: #{tpu_custom_call.1} parent=1 // pred_check_branch
      %199 = sbr.rel (0) target = $region25
    $region24: #{tpu_custom_call.1} parent=1 // pred_region
      %s201 = ssub.s32 128, 128
      %202 = vsyncadd [#allocation4], %s201
      %s204 = sshll.u32 [#allocation5], 4
      %s205 = int_to_ptr.vmem [resolvable:$true] %s204
      %207 = dma.vmem_to_hbm [thread:$0]  %s205, 128, %s4, [#allocation4]
    $region25: #{tpu_custom_call.1} parent=1 // pred_fallthru
      _
    // Predicated region
    $region26: #{tpu_custom_call.1} parent=1 // pred_check
      _
    $region27: #{tpu_custom_call.1} parent=1 // pred_check_branch
      %209 = sbr.rel (0) target = $region29
    $region28: #{tpu_custom_call.1} parent=1 // pred_region
      %210 = dma.done [#allocation4], 128
    $region29: #{tpu_custom_call.1} parent=1 // pred_fallthru
      _
    %211 = vsyncpa [#allocation3], 1
    %212 = vsyncpa [#allocation4], 1

// kernel: tpu_custom_call.1
$region0: #{tpu_custom_call.1}
  #allocation0 [shape = 'u32[]', space=smem, size = 0x4, offset = 0x4, fixed_abs, tag = 'smem constant byte address 0x4 - core index']
  #allocation1 [shape = 'u32[144,128]{1,0:T(1,128)}', space=vmem, size = 0x12000, scoped, tag = 'internal scratch']
  %s0 = inlined_call_operand.vmem [shape: f32[8,32], index: 0, kind: input, shape index: {}]
  %s1 = inlined_call_operand.hbm [shape: f32[32,128], index: 1, kind: input, shape index: {}]
  %s2 = inlined_call_operand.vmem [shape: f32[1,128], index: 2, kind: input, shape index: {}]
  %s3 = inlined_call_operand.vmem [shape: s32[8,1], index: 3, kind: input, shape index: {}]
  %s4 = inlined_call_operand.hbm [shape: f32[1,8,128], index: 4, kind: output, shape index: {}]
  %s5 = sld [smem:[#allocation0]]
  $region30: #{tpu_custom_call.1} parent=0
    _
  %s7 = ssub.s32 1, %s5
  %s8 = scalar_select 0, %s7, %s5
  $region1: #{tpu_custom_call.1} parent=0
    #allocation2 [shape = 'u8[16384]{0}', space=vmem, size = 0x4000, scoped, tag = 'input window, operand 1, single buffered']
    #allocation3 [shape = 's32[1]{0}', space=sflag, size = 0x4, scoped, tag = 'scoped memory for tpu_custom_call.1']
    #allocation4 [shape = 's32[1]{0}', space=sflag, size = 0x4, scoped, tag = 'scoped memory for tpu_custom_call.1']
    #allocation5 [shape = 'u8[4096]{0}', space=vmem, size = 0x1000, scoped, tag = 'output window, operand 0, single buffered']
    %9 = vsyncpa [#allocation3], 0
    %10 = vsyncpa [#allocation4], 0
    // Predicated region
    $region2: #{tpu_custom_call.1} parent=1 // pred_check
      _
    $region3: #{tpu_custom_call.1} parent=1 // pred_check_branch
      %12 = sbr.rel (0) target = $region5
    $region4: #{tpu_custom_call.1} parent=1 // pred_region
      _
    $region5: #{tpu_custom_call.1} parent=1 // pred_fallthru
      _
    // Predicated region
    $region6: #{tpu_custom_call.1} parent=1 // pred_check
      _
    $region7: #{tpu_custom_call.1} parent=1 // pred_check_branch
      %14 = sbr.rel (0) target = $region9
    $region8: #{tpu_custom_call.1} parent=1 // pred_region
      %s16 = ssub.s32 512, 512
      %17 = vsyncadd [#allocation3], %s16
      %s18 = sshll.u32 [#allocation2], 4
      %s19 = int_to_ptr.vmem [resolvable:$true] %s18
      %24 = dma.hbm_to_vmem [thread:$0]  %s1, 512, %s19, [#allocation3], 128, 128, 8
    $region9: #{tpu_custom_call.1} parent=1 // pred_fallthru
      _
    // Predicated region
    $region10: #{tpu_custom_call.1} parent=1 // pred_check
      _
    $region11: #{tpu_custom_call.1} parent=1 // pred_check_branch
      %26 = sbr.rel (0) target = $region13
    $region12: #{tpu_custom_call.1} parent=1 // pred_region
      _
    $region13: #{tpu_custom_call.1} parent=1 // pred_fallthru
      _
    // Predicated region
    $region14: #{tpu_custom_call.1} parent=1 // pred_check
      _
    $region15: #{tpu_custom_call.1} parent=1 // pred_check_branch
      %28 = sbr.rel (0) target = $region17
    $region16: #{tpu_custom_call.1} parent=1 // pred_region
      _
    $region17: #{tpu_custom_call.1} parent=1 // pred_fallthru
      _
    // Predicated region
    $region18: #{tpu_custom_call.1} parent=1 // pred_check
      _
    $region19: #{tpu_custom_call.1} parent=1 // pred_check_branch
      %30 = sbr.rel (0) target = $region21
    $region20: #{tpu_custom_call.1} parent=1 // pred_region
      %31 = dma.done [#allocation3], 512
    $region21: #{tpu_custom_call.1} parent=1 // pred_fallthru
      _
    %v32 = vld [vmem:[%s0] sm:$0xff]
    %v33 = vld [vmem:[#allocation2] sm:$0xff]
    %v34 = vld [vmem:[#allocation2 + $0x8] sm:$0xff]
    %v35 = vld [vmem:[#allocation2 + $0x10] sm:$0xff]
    %v36 = vld [vmem:[#allocation2 + $0x18] sm:$0xff]
    %v37 = vld [vmem:[%s2] sm:$0x1]
    %v39 = vlaneseq
    %v40 = vshrl.u32 %v39, 7
    %v41 = vsub.s32 0, %v40
    %v42 = vrot.slane %v37, %v41
    %vm44 = vcmask 261120
    %v46 = vsel %vm44, %v32, 0
    %48 = vmatprep.subr.mxu0 0.0
    %49 = vmatpush1.msra.mxu0 %v33
    %50 = vmatprep.subr.mxu0 0.0
    %51 = vmatpush1.msra.mxu0 %v34
    %52 = vmatprep.subr.mxu0 0.0
    %53 = vmatpush1.msra.mxu0 %v35
    %54 = vmatprep.subr.mxu0 0.0
    %55 = vmatpush1.msra.mxu0 %v36
    %56 = vmatprep.subr.mxu0 0.0
    %57 = vmatpush1.msra.mxu0 0.0
    %58 = vmatprep.subr.mxu0 0.0
    %59 = vmatpush1.msra.mxu0 0.0
    %60 = vmatprep.subr.mxu0 0.0
    %61 = vmatpush1.msra.mxu0 0.0
    %62 = vmatprep.subr.mxu0 0.0
    %63 = vmatpush1.msra.mxu0 0.0
    %64 = vmatprep.subr.mxu0 0.0
    %65 = vmatpush1.msra.mxu0 0.0
    %66 = vmatprep.subr.mxu0 0.0
    %67 = vmatpush1.msra.mxu0 0.0
    %68 = vmatprep.subr.mxu0 0.0
    %69 = vmatpush1.msra.mxu0 0.0
    %70 = vmatprep.subr.mxu0 0.0
    %71 = vmatpush1.msra.mxu0 0.0
    %72 = vmatprep.subr.mxu0 0.0
    %73 = vmatpush1.msra.mxu0 0.0
    %74 = vmatprep.subr.mxu0 0.0
    %75 = vmatpush1.msra.mxu0 0.0
    %76 = vmatprep.subr.mxu0 0.0
    %77 = vmatpush1.msra.mxu0 0.0
    %78 = vmatprep.subr.mxu0 0.0
    %79 = vmatpush1.msra.mxu0 0.0
    %80 = vmatprep.subr.mxu0 0.0
    %81 = vmatpush1.msra.mxu0 0.0
    %82 = vmatprep.subr.mxu0 0.0
    %83 = vmatpush1.msra.mxu0 0.0
    %84 = vmatprep.subr.mxu0 0.0
    %85 = vmatpush1.msra.mxu0 0.0
    %86 = vmatprep.subr.mxu0 0.0
    %87 = vmatpush1.msra.mxu0 0.0
    %88 = vmatprep.subr.mxu0 0.0
    %89 = vmatpush1.msra.mxu0 0.0
    %90 = vmatprep.subr.mxu0 0.0
    %91 = vmatpush1.msra.mxu0 0.0
    %92 = vmatprep.subr.mxu0 0.0
    %93 = vmatpush1.msra.mxu0 0.0
    %94 = vmatprep.subr.mxu0 0.0
    %95 = vmatpush1.msra.mxu0 0.0
    %96 = vmatprep.subr.mxu0 0.0
    %97 = vmatpush1.msra.mxu0 0.0
    %98 = vmatprep.subr.mxu0 0.0
    %99 = vmatpush1.msra.mxu0 0.0
    %100 = vmatprep.subr.mxu0 0.0
    %101 = vmatpush1.msra.mxu0 0.0
    %102 = vmatprep.subr.mxu0 0.0
    %103 = vmatpush1.msra.mxu0 0.0
    %104 = vmatprep.subr.mxu0 0.0
    %105 = vmatpush1.msra.mxu0 0.0
    %106 = vmatprep.subr.mxu0 0.0
    %107 = vmatpush1.msra.mxu0 0.0
    %108 = vmatprep.subr.mxu0 0.0
    %109 = vmatpush1.msra.mxu0 0.0
    %110 = vmatprep.subr.mxu0 0.0
    %111 = vmatpush1.msra.mxu0 0.0
    %112 = vmatprep.mubr.f32.mxu0 0.0
    %113 = vmatmul.mubr.f32.gmra.mrb[0].mxu0 %v46
    %v114 = vpop.f32.mrb[0].mxu0
    %v115 = vadd.f32 %v42, %v114
    %v116 = vpop.f32.mrb[0].mxu0
    %117 = vdwg.mxu0
    %118 = vmax.xlane.f32.xlu0 %v115
    %v119 = vpop.xlane.xlu0 %118
    %v120 = vsub.f32 %v115, %v119
    %v121 = vmul.f32 %v120, 1.442695
    %v122 = vpow.pop %v121
    %123 = vadd.xlane.f32.xlu0 %v122
    %v124 = vpop.xlane.xlu0 %123
    %v125 = vlog2.pop %v124
    %v126 = vmul.f32 %v125, 0.6931472
    %v127 = vadd.f32 %v126, %v119
    %v128 = vld [vmem:[%s3] sm:$0xff]
    %v129 = vlaneseq
    %v130 = vand.u32 %v129, 127
    %131 = vset.pattern.permute.xlu0 0
    %132 = vperm.xlu0 %131, %v128
    %v133 = vpop.permute.xlu0 %132
    %vm134 = vcmp.eq.s32.totalorder %v130, %v133
    %v135 = vsel %vm134, %v115, 0.0
    %136 = vadd.xlane.f32.xlu0 %v135
    %v137 = vpop.xlane.xlu0 %136
    %v138 = vsub.f32 %v127, %v137
    %vm139 = vcmp.eq.f32.partialorder %v115, %v119
    %v140 = vsel %vm139, %v130, 128
    %v141 = vand.u32 %v140, 65535
    %v142 = vshra.s32 %v140, 16
    %v143 = vcvt.s32.f32 %v141
    %v144 = vcvt.s32.f32 %v142
    %145 = vmin.xlane.f32.xlu0 %v144
    %v146 = vpop.xlane.xlu0 %145
    %vm147 = vcmp.eq.f32.partialorder %v144, %v146
    %v148 = vsel %vm147, %v143, inf
    %149 = vmin.xlane.f32.xlu0 %v148
    %v150 = vpop.xlane.xlu0 %149
    %v151 = vcvt.f32.s32 %v150
    %v152 = vcvt.f32.s32 %v146
    %v153 = vshll.u32 %v152, 16
    %v154 = vadd.s32 %v153, %v151
    %vm155 = vcmp.eq.s32.totalorder %v154, %v128
    %v156 = vsel %vm155, 1, 0
    %v157 = vcvt.s32.f32 %v156
    %s158 = smul.u32 0, 8
    %v159 = vlaneseq
    %v160 = vshrl.u32 %v159, 7
    %v161 = vstv %s158
    %v162 = vadd.s32 %v161, %v160
    %vm163 = vcmp.lt.s32.totalorder %v162, 8
    %v164 = vsel %vm163, %v138, 0.0
    %vm165 = vcmask 7168
    %v166 = vsel %vm165, %v164, 0.0
    %167 = vadd.xlane.f32.xlu0 %v166
    %v168 = vpop.xlane.xlu0 %167
    %v169 = vrot.slane %v168, 4
    %v170 = vadd.f32 %v168, %v169
    %v171 = vrot.slane %v170, 2
    %v172 = vadd.f32 %v170, %v171
    %v173 = vrot.slane %v172, 1
    %v174 = vadd.f32 %v172, %v173
    %s175 = vtos %v174
    %v176 = vsel %vm163, %v157, 0.0
    %v177 = vsel %vm165, %v176, 0.0
    %178 = vadd.xlane.f32.xlu0 %v177
    %v179 = vpop.xlane.xlu0 %178
    %v180 = vrot.slane %v179, 4
    %v181 = vadd.f32 %v179, %v180
    %v182 = vrot.slane %v181, 2
    %v183 = vadd.f32 %v181, %v182
    %v184 = vrot.slane %v183, 1
    %v185 = vadd.f32 %v183, %v184
    %s186 = vtos %v185
    %vm187 = vcmp.eq.s32.totalorder %v160, 0
    %vm188 = vcmp.eq.s32.totalorder %v130, 0
    %vm189 = vmand %vm187, %vm188
    %v190 = vstv %s175
    %v191 = vsel %vm189, %v190, 0.0
    %vm192 = vcmp.eq.s32.totalorder %v130, 1
    %vm193 = vmand %vm187, %vm192
    %v194 = vstv %s186
    %v195 = vsel %vm193, %v194, 0.0
    %v196 = vadd.f32 %v191, %v195
    %197 = vst [vmem:[#allocation5] sm:$0xff] %v196
    // Predicated region
    $region22: #{tpu_custom_call.1} parent=1 // pred_check
      _
    $region23: #{tpu_custom_call.1} parent=1 // pred_check_branch
      %199 = sbr.rel (0) target = $region25
    $region24: #{tpu_custom_call.1} parent=1 // pred_region
      %s201 = ssub.s32 128, 128
      %202 = vsyncadd [#allocation4], %s201
      %s204 = sshll.u32 [#allocation5], 4
      %s205 = int_to_ptr.vmem [resolvable:$true] %s204
      %207 = dma.vmem_to_hbm [thread:$0]  %s205, 128, %s4, [#allocation4]
    $region25: #{tpu_custom_call.1} parent=1 // pred_fallthru
      _
    // Predicated region
    $region26: #{tpu_custom_call.1} parent=1 // pred_check
      _
    $region27: #{tpu_custom_call.1} parent=1 // pred_check_branch
      %209 = sbr.rel (0) target = $region29
    $region28: #{tpu_custom_call.1} parent=1 // pred_region
      %210 = dma.done [#allocation4], 128
    $region29: #{tpu_custom_call.1} parent=1 // pred_fallthru
      _
    %211 = vsyncpa [#allocation3], 1
    %212 = vsyncpa [#allocation4], 1

</llo_original>
